<compile_context>
chip_gen: v5e
topology: v5e:2x2
jax: 0.10.0
libtpu: 0.0.40
codegen_flags: <defaults>
</compile_context>

<pallas_src>
import functools

import jax
import jax.numpy as jnp
from jax.experimental import pallas as pl
from jax.experimental.pallas import tpu as pltpu


def _round_up(x: int, m: int) -> int:
    return ((x + m - 1) // m) * m


def _fused_mlp_kernel(x_ref, *refs, num_trunk_layers: int):
    """Fused MLP forward for one batch tile.

    refs = (w0, b0, w1, b1, ..., w_head, b_head, o_ref).
    Weights are bf16, biases f32; all feature dims pre-padded to multiples of 128
    so every matmul and the final store are lane-dense.  Intermediate activations
    never leave VMEM/vregs.
    """
    o_ref = refs[-1]
    wb = refs[:-1]

    h = x_ref[...]                                          # bf16 (tile_b, Din_pad)
    # Trunk: Linear + ReLU.  Static unroll is fine at small layer counts.
    for l in range(num_trunk_layers):
        w = wb[2 * l][...]                                  # bf16 (D_pad, D_pad)
        b = wb[2 * l + 1][...]                              # f32  (1, D_pad)
        z = jnp.dot(h, w, preferred_element_type=jnp.float32) + b
        h = jnp.maximum(z, 0.0).astype(jnp.bfloat16)        # ReLU in f32, back to bf16
    # Head: Linear, no ReLU; result stored in f32.
    w = wb[2 * num_trunk_layers][...]
    b = wb[2 * num_trunk_layers + 1][...]
    y = jnp.dot(h, w, preferred_element_type=jnp.float32) + b
    o_ref[...] = y.astype(o_ref.dtype)


def init_params(key, in_dim, h_dim, out_dim, num_layers):
    """Deterministic init mirroring BasePyTorchModel._initialize_weights_for_one_model:
       Linear weights ~ xavier_normal_, Linear biases ~ uniform_(0, 1)."""
    dims = [(in_dim, h_dim)] + [(h_dim, h_dim)] * (num_layers - 1) + [(h_dim, out_dim)]
    params = []
    for (fan_in, fan_out) in dims:
        key, kw, kb = jax.random.split(key, 3)
        std = (2.0 / (fan_in + fan_out)) ** 0.5             # xavier normal, gain=1
        # Weight stored as (in, out) == transpose of PyTorch's (out, in).
        w = std * jax.random.normal(kw, (fan_in, fan_out), dtype=jnp.float32)
        bias = jax.random.uniform(kb, (fan_out,), dtype=jnp.float32)  # U[0, 1)
        params.append((w, bias))
    return params


def prepare_params(params):
    """Zero-pad all dims ONCE to lane-dense (multiple-of-128) sizes and cast
    weights to bf16 (biases stay f32, pre-shaped (1, fan_out_pad)).

    Zero padding preserves the math exactly: padded input lanes are zero and padded
    weight rows/cols + bias lanes are zero, so padded output lanes stay exactly
    zero through ReLU.
    """
    padded = []
    for (w, b) in params:
        fi, fo = w.shape
        fi_p, fo_p = _round_up(fi, 128), _round_up(fo, 128)
        w_p = jnp.zeros((fi_p, fo_p), jnp.bfloat16).at[:fi, :fo].set(
            w.astype(jnp.bfloat16))
        b_p = jnp.zeros((1, fo_p), jnp.float32).at[0, :fo].set(b)
        padded.append((w_p, b_p))
    return padded


@functools.partial(jax.jit, static_argnames=("out_dim",))
def multi_layer_regressor_forward(x, padded_params, out_dim):
    """forward(x) = head(trunk(x)) as a single fused, batch-tiled Pallas kernel."""
    B, Din = x.shape
    Din_pad = padded_params[0][0].shape[0]
    Dout_pad = padded_params[-1][0].shape[1]
    num_trunk = len(padded_params) - 1

    # Batch tiling: 256-row tiles fill the MXU (2x256 on v6e/v7x, 4x 128x128 on
    # v5e) and give the pipeline something to overlap; small batches use a single
    # sublane-aligned tile (bf16 sublane tile = 16).
    TILE_B = 256
    if B <= TILE_B:
        tile_b = _round_up(max(B, 16), 16)
        B_pad = tile_b
    else:
        tile_b = TILE_B
        B_pad = _round_up(B, tile_b)
    num_tiles = B_pad // tile_b

    # Pad + cast the input once (zeros in the padded rows/lanes keep the math exact).
    x_pad = jnp.zeros((B_pad, Din_pad), jnp.bfloat16).at[:B, :Din].set(
        x.astype(jnp.bfloat16))

    flat_wb = []
    for (w, b) in padded_params:
        flat_wb += [w, b]

    kernel = functools.partial(_fused_mlp_kernel, num_trunk_layers=num_trunk)

    in_specs = [pl.BlockSpec((tile_b, Din_pad), lambda i: (i, 0))]
    for arr in flat_wb:
        # Constant block index -> parameters stay VMEM-resident across batch tiles.
        in_specs.append(pl.BlockSpec(arr.shape, lambda i: (0, 0)))

    # Explicit VMEM budget: double-buffered params + pipelined x/out tiles +
    # f32 intermediates, with 2x headroom (floor 8 MiB, cap 64 MiB for v7x).
    param_bytes = sum(int(a.size) * a.dtype.itemsize for a in flat_wb)
    act_bytes = tile_b * (Din_pad * 2 + Dout_pad * 4)          # bf16 x tile + f32 out tile
    h_pad = max(w.shape[1] for (w, _) in padded_params)
    scratch_bytes = 2 * tile_b * h_pad * 4                     # f32 z / h intermediates
    needed = 2 * param_bytes + 2 * act_bytes + scratch_bytes
    vmem_limit = int(min(max(2 * needed, 8 << 20), 64 << 20))

    # Advisory cost estimate so XLA schedules around this kernel.
    flops = 0
    for (w, _) in padded_params:
        flops += 2 * B_pad * w.shape[0] * w.shape[1] + B_pad * w.shape[1]
    bytes_accessed = x_pad.size * 2 + B_pad * Dout_pad * 4 + param_bytes

    out_pad = pl.pallas_call(
        kernel,
        out_shape=jax.ShapeDtypeStruct((B_pad, Dout_pad), jnp.float32),
        grid=(num_tiles,),
        in_specs=in_specs,
        out_specs=pl.BlockSpec((tile_b, Dout_pad), lambda i: (i, 0)),
        compiler_params=pltpu.CompilerParams(
            dimension_semantics=("parallel",),     # megacore-shard batch tiles on v7x
            vmem_limit_bytes=vmem_limit,
        ),
        cost_estimate=pl.CostEstimate(
            flops=flops, transcendentals=0, bytes_accessed=bytes_accessed),
    )(x_pad, *flat_wb)

    # Output stays lane-dense/padded inside the kernel; slice only here at the consumer.
    return out_pad[:B, :out_dim]


if __name__ == "__main__":
    # Small config consistent with BaseModelConfig(in_dim, h_dim, out_dim, num_layers).
    batch, in_dim, h_dim, out_dim, num_layers = 8, 16, 32, 4, 3

    key = jax.random.PRNGKey(0)
    key, kx = jax.random.split(key)
    x = jax.random.normal(kx, (batch, in_dim), dtype=jnp.float32)

    params = init_params(key, in_dim, h_dim, out_dim, num_layers)
    padded_params = prepare_params(params)

    out = multi_layer_regressor_forward(x, padded_params, out_dim)
    out = jax.block_until_ready(out)
    assert out.shape == (batch, out_dim)

    # 1) Tight check against a plain-JAX reference that mirrors the kernel's bf16
    #    weight/activation casts (f32 accumulation, f32 bias/ReLU).
    hb = x.astype(jnp.bfloat16)
    for (w, b) in params[:-1]:
        hb = jnp.maximum(
            jnp.dot(hb, w.astype(jnp.bfloat16),
                    preferred_element_type=jnp.float32) + b, 0.0
        ).astype(jnp.bfloat16)
    ref_bf16 = jnp.dot(hb, params[-1][0].astype(jnp.bfloat16),
                       preferred_element_type=jnp.float32) + params[-1][1]
    assert jnp.allclose(out, ref_bf16, atol=2e-3, rtol=2e-3)

    # 2) Loose semantic check against the full-f32 PyTorch-equivalent reference
    #    (tolerance relaxed because the kernel uses bf16 weights/activations).
    ref = x
    for (w, b) in params[:-1]:
        ref = jnp.maximum(ref @ w + b, 0.0)
    ref = ref @ params[-1][0] + params[-1][1]
    assert jnp.allclose(out, ref, atol=5e-2, rtol=5e-2)

    print("KERNEL_OK")
</pallas_src>

<mosaic_0001>
module attributes {stable_mosaic.version = 11 : i64} {
  func.func @_fused_mlp_kernel(%arg0: i32, %arg1: memref<16x128xbf16, #tpu.memory_space<vmem>>, %arg2: memref<128x128xbf16, #tpu.memory_space<vmem>>, %arg3: memref<1x128xf32, #tpu.memory_space<vmem>>, %arg4: memref<128x128xbf16, #tpu.memory_space<vmem>>, %arg5: memref<1x128xf32, #tpu.memory_space<vmem>>, %arg6: memref<128x128xbf16, #tpu.memory_space<vmem>>, %arg7: memref<1x128xf32, #tpu.memory_space<vmem>>, %arg8: memref<128x128xbf16, #tpu.memory_space<vmem>>, %arg9: memref<1x128xf32, #tpu.memory_space<vmem>>, %arg10: memref<16x128xf32, #tpu.memory_space<vmem>>) attributes {dimension_semantics = [#tpu.dimension_semantics<parallel>], iteration_bounds = array<i64: 1>, scalar_prefetch = 0 : i64, scratch_operands = 0 : i64, tpu.core_type = #tpu.core_type<tc>, window_params = [{transform_indices = @transform_0, window_bounds = array<i64: 16, 128>}, {pipeline_mode = #tpu.pipeline_mode<synchronous>, transform_indices = @transform_1, window_bounds = array<i64: 128, 128>}, {pipeline_mode = #tpu.pipeline_mode<synchronous>, transform_indices = @transform_2, window_bounds = array<i64: 1, 128>}, {pipeline_mode = #tpu.pipeline_mode<synchronous>, transform_indices = @transform_3, window_bounds = array<i64: 128, 128>}, {pipeline_mode = #tpu.pipeline_mode<synchronous>, transform_indices = @transform_4, window_bounds = array<i64: 1, 128>}, {pipeline_mode = #tpu.pipeline_mode<synchronous>, transform_indices = @transform_5, window_bounds = array<i64: 128, 128>}, {pipeline_mode = #tpu.pipeline_mode<synchronous>, transform_indices = @transform_6, window_bounds = array<i64: 1, 128>}, {pipeline_mode = #tpu.pipeline_mode<synchronous>, transform_indices = @transform_7, window_bounds = array<i64: 128, 128>}, {pipeline_mode = #tpu.pipeline_mode<synchronous>, transform_indices = @transform_8, window_bounds = array<i64: 1, 128>}, {transform_indices = @transform_9, window_bounds = array<i64: 16, 128>}]} {
    %c0 = arith.constant 0 : index
    %c0_0 = arith.constant 0 : index
    %0 = vector.load %arg1[%c0, %c0_0] : memref<16x128xbf16, #tpu.memory_space<vmem>>, vector<16x128xbf16>
    %c0_1 = arith.constant 0 : index
    %c0_2 = arith.constant 0 : index
    %1 = vector.load %arg2[%c0_1, %c0_2] : memref<128x128xbf16, #tpu.memory_space<vmem>>, vector<128x128xbf16>
    %c0_3 = arith.constant 0 : index
    %c0_4 = arith.constant 0 : index
    %2 = vector.load %arg3[%c0_3, %c0_4] : memref<1x128xf32, #tpu.memory_space<vmem>>, vector<1x128xf32>
    %cst = arith.constant dense<0.000000e+00> : vector<16x128xf32>
    %3 = tpu.matmul %0, %1, %cst {dimension_numbers = #tpu.dot_dimension_numbers<[1], [0], [0], [1], [0, 0, 1, 1], [], []>} : vector<16x128xbf16>, vector<128x128xbf16>, vector<16x128xf32> -> vector<16x128xf32>
    %4 = vector.broadcast %2 : vector<1x128xf32> to vector<16x128xf32>
    %5 = arith.addf %3, %4 : vector<16x128xf32>
    %cst_5 = arith.constant 0.000000e+00 : f32
    %6 = vector.broadcast %cst_5 : f32 to vector<16x128xf32>
    %7 = arith.maximumf %5, %6 : vector<16x128xf32>
    %8 = arith.truncf %7 : vector<16x128xf32> to vector<16x128xbf16>
    %c0_6 = arith.constant 0 : index
    %c0_7 = arith.constant 0 : index
    %9 = vector.load %arg4[%c0_6, %c0_7] : memref<128x128xbf16, #tpu.memory_space<vmem>>, vector<128x128xbf16>
    %c0_8 = arith.constant 0 : index
    %c0_9 = arith.constant 0 : index
    %10 = vector.load %arg5[%c0_8, %c0_9] : memref<1x128xf32, #tpu.memory_space<vmem>>, vector<1x128xf32>
    %cst_10 = arith.constant dense<0.000000e+00> : vector<16x128xf32>
    %11 = tpu.matmul %8, %9, %cst_10 {dimension_numbers = #tpu.dot_dimension_numbers<[1], [0], [0], [1], [0, 0, 1, 1], [], []>} : vector<16x128xbf16>, vector<128x128xbf16>, vector<16x128xf32> -> vector<16x128xf32>
    %12 = vector.broadcast %10 : vector<1x128xf32> to vector<16x128xf32>
    %13 = arith.addf %11, %12 : vector<16x128xf32>
    %cst_11 = arith.constant 0.000000e+00 : f32
    %14 = vector.broadcast %cst_11 : f32 to vector<16x128xf32>
    %15 = arith.maximumf %13, %14 : vector<16x128xf32>
    %16 = arith.truncf %15 : vector<16x128xf32> to vector<16x128xbf16>
    %c0_12 = arith.constant 0 : index
    %c0_13 = arith.constant 0 : index
    %17 = vector.load %arg6[%c0_12, %c0_13] : memref<128x128xbf16, #tpu.memory_space<vmem>>, vector<128x128xbf16>
    %c0_14 = arith.constant 0 : index
    %c0_15 = arith.constant 0 : index
    %18 = vector.load %arg7[%c0_14, %c0_15] : memref<1x128xf32, #tpu.memory_space<vmem>>, vector<1x128xf32>
    %cst_16 = arith.constant dense<0.000000e+00> : vector<16x128xf32>
    %19 = tpu.matmul %16, %17, %cst_16 {dimension_numbers = #tpu.dot_dimension_numbers<[1], [0], [0], [1], [0, 0, 1, 1], [], []>} : vector<16x128xbf16>, vector<128x128xbf16>, vector<16x128xf32> -> vector<16x128xf32>
    %20 = vector.broadcast %18 : vector<1x128xf32> to vector<16x128xf32>
    %21 = arith.addf %19, %20 : vector<16x128xf32>
    %cst_17 = arith.constant 0.000000e+00 : f32
    %22 = vector.broadcast %cst_17 : f32 to vector<16x128xf32>
    %23 = arith.maximumf %21, %22 : vector<16x128xf32>
    %24 = arith.truncf %23 : vector<16x128xf32> to vector<16x128xbf16>
    %c0_18 = arith.constant 0 : index
    %c0_19 = arith.constant 0 : index
    %25 = vector.load %arg8[%c0_18, %c0_19] : memref<128x128xbf16, #tpu.memory_space<vmem>>, vector<128x128xbf16>
    %c0_20 = arith.constant 0 : index
    %c0_21 = arith.constant 0 : index
    %26 = vector.load %arg9[%c0_20, %c0_21] : memref<1x128xf32, #tpu.memory_space<vmem>>, vector<1x128xf32>
    %cst_22 = arith.constant dense<0.000000e+00> : vector<16x128xf32>
    %27 = tpu.matmul %24, %25, %cst_22 {dimension_numbers = #tpu.dot_dimension_numbers<[1], [0], [0], [1], [0, 0, 1, 1], [], []>} : vector<16x128xbf16>, vector<128x128xbf16>, vector<16x128xf32> -> vector<16x128xf32>
    %28 = vector.broadcast %26 : vector<1x128xf32> to vector<16x128xf32>
    %29 = arith.addf %27, %28 : vector<16x128xf32>
    %c0_23 = arith.constant 0 : index
    %c0_24 = arith.constant 0 : index
    %30 = vector.load %arg10[%c0_23, %c0_24] : memref<16x128xf32, #tpu.memory_space<vmem>>, vector<16x128xf32>
    tpu.vector_store %arg10[%c0_23, %c0_24], %29 {strides = array<i32>} : memref<16x128xf32, #tpu.memory_space<vmem>>, vector<16x128xf32>,
    return
  }
  func.func @transform_0(%arg0: i32) -> (i32, i32) {
    %c0_i32 = arith.constant 0 : i32
    %c0_i32_0 = arith.constant 0 : i32
    return %arg0, %c0_i32 : i32, i32
  }
  func.func @transform_1(%arg0: i32) -> (i32, i32) {
    %c0_i32 = arith.constant 0 : i32
    %c0_i32_0 = arith.constant 0 : i32
    %c0_i32_1 = arith.constant 0 : i32
    return %c0_i32, %c0_i32_0 : i32, i32
  }
  func.func @transform_2(%arg0: i32) -> (i32, i32) {
    %c0_i32 = arith.constant 0 : i32
    %c0_i32_0 = arith.constant 0 : i32
    %c0_i32_1 = arith.constant 0 : i32
    return %c0_i32, %c0_i32_0 : i32, i32
  }
  func.func @transform_3(%arg0: i32) -> (i32, i32) {
    %c0_i32 = arith.constant 0 : i32
    %c0_i32_0 = arith.constant 0 : i32
    %c0_i32_1 = arith.constant 0 : i32
    return %c0_i32, %c0_i32_0 : i32, i32
  }
  func.func @transform_4(%arg0: i32) -> (i32, i32) {
    %c0_i32 = arith.constant 0 : i32
    %c0_i32_0 = arith.constant 0 : i32
    %c0_i32_1 = arith.constant 0 : i32
    return %c0_i32, %c0_i32_0 : i32, i32
  }
  func.func @transform_5(%arg0: i32) -> (i32, i32) {
    %c0_i32 = arith.constant 0 : i32
    %c0_i32_0 = arith.constant 0 : i32
    %c0_i32_1 = arith.constant 0 : i32
    return %c0_i32, %c0_i32_0 : i32, i32
  }
  func.func @transform_6(%arg0: i32) -> (i32, i32) {
    %c0_i32 = arith.constant 0 : i32
    %c0_i32_0 = arith.constant 0 : i32
    %c0_i32_1 = arith.constant 0 : i32
    return %c0_i32, %c0_i32_0 : i32, i32
  }
  func.func @transform_7(%arg0: i32) -> (i32, i32) {
    %c0_i32 = arith.constant 0 : i32
    %c0_i32_0 = arith.constant 0 : i32
    %c0_i32_1 = arith.constant 0 : i32
    return %c0_i32, %c0_i32_0 : i32, i32
  }
  func.func @transform_8(%arg0: i32) -> (i32, i32) {
    %c0_i32 = arith.constant 0 : i32
    %c0_i32_0 = arith.constant 0 : i32
    %c0_i32_1 = arith.constant 0 : i32
    return %c0_i32, %c0_i32_0 : i32, i32
  }
  func.func @transform_9(%arg0: i32) -> (i32, i32) {
    %c0_i32 = arith.constant 0 : i32
    %c0_i32_0 = arith.constant 0 : i32
    return %arg0, %c0_i32 : i32, i32
  }
}

</mosaic_0001>

<llo_original>
// kernel: multi_layer_regressor_forward.1
$region0: #{multi_layer_regressor_forward.1}
  #allocation0 [shape = 'u32[]', space=smem, size = 0x4, offset = 0x4, fixed_abs, tag = 'smem constant byte address 0x4 - core index']
  #allocation1 [shape = 'u32[72,128]{1,0:T(1,128)}', space=vmem, size = 0x9000, scoped, tag = 'internal scratch']
  %s0 = inlined_call_operand.vmem [shape: bf16[16,128], index: 0, kind: input, shape index: {}]
  %s1 = inlined_call_operand.hbm [shape: bf16[128,128], index: 1, kind: input, shape index: {}]
  %s2 = inlined_call_operand.vmem [shape: f32[1,128], index: 2, kind: input, shape index: {}]
  %s3 = inlined_call_operand.hbm [shape: bf16[128,128], index: 3, kind: input, shape index: {}]
  %s4 = inlined_call_operand.vmem [shape: f32[1,128], index: 4, kind: input, shape index: {}]
  %s5 = inlined_call_operand.hbm [shape: bf16[128,128], index: 5, kind: input, shape index: {}]
  %s6 = inlined_call_operand.vmem [shape: f32[1,128], index: 6, kind: input, shape index: {}]
  %s7 = inlined_call_operand.hbm [shape: bf16[128,128], index: 7, kind: input, shape index: {}]
  %s8 = inlined_call_operand.vmem [shape: f32[1,128], index: 8, kind: input, shape index: {}]
  %s9 = inlined_call_operand.vmem [shape: f32[16,128], index: 9, kind: output, shape index: {}]
  %s10 = sld [smem:[#allocation0]]
  $region62: #{multi_layer_regressor_forward.1} parent=0
    _
  %s12 = ssub.s32 1, %s10
  %s13 = scalar_select 0, %s12, %s10
  $region1: #{multi_layer_regressor_forward.1} parent=0
    #allocation2 [shape = 'u8[32768]{0}', space=vmem, size = 0x8000, scoped, tag = 'input window, operand 1, single buffered']
    #allocation3 [shape = 's32[1]{0}', space=sflag, size = 0x4, scoped, tag = 'scoped memory for multi_layer_regressor_forward.1']
    #allocation4 [shape = 'u8[32768]{0}', space=vmem, size = 0x8000, scoped, tag = 'input window, operand 3, single buffered']
    #allocation5 [shape = 's32[1]{0}', space=sflag, size = 0x4, scoped, tag = 'scoped memory for multi_layer_regressor_forward.1']
    #allocation6 [shape = 'u8[32768]{0}', space=vmem, size = 0x8000, scoped, tag = 'input window, operand 5, single buffered']
    #allocation7 [shape = 'u8[32768]{0}', space=vmem, size = 0x8000, scoped, tag = 'input window, operand 7, single buffered']
    #allocation8 [shape = 's32[1]{0}', space=sflag, size = 0x4, scoped, tag = 'scoped memory for multi_layer_regressor_forward.1']
    %14 = vsyncpa [#allocation3], 0
    %15 = vsyncpa [#allocation5], 0
    %16 = vsyncpa [#allocation8], 0
    // Predicated region
    $region2: #{multi_layer_regressor_forward.1} parent=1 // pred_check
      _
    $region3: #{multi_layer_regressor_forward.1} parent=1 // pred_check_branch
      %18 = sbr.rel (0) target = $region5
    $region4: #{multi_layer_regressor_forward.1} parent=1 // pred_region
      _
    $region5: #{multi_layer_regressor_forward.1} parent=1 // pred_fallthru
      _
    // Predicated region
    $region6: #{multi_layer_regressor_forward.1} parent=1 // pred_check
      _
    $region7: #{multi_layer_regressor_forward.1} parent=1 // pred_check_branch
      %20 = sbr.rel (0) target = $region9
    $region8: #{multi_layer_regressor_forward.1} parent=1 // pred_region
      %22 = vsyncadd [#allocation3], 0
      %s23 = sshll.u32 %s1, 4
      %s24 = int_to_ptr.hbm [resolvable:$true] %s23
      %s25 = sshll.u32 [#allocation2], 4
      %s26 = int_to_ptr.vmem [resolvable:$true] %s25
      %31 = dma.hbm_to_vmem [thread:$0]  %s24, 1024, %s26, [#allocation3], 64, 64, 4
    $region9: #{multi_layer_regressor_forward.1} parent=1 // pred_fallthru
      _
    // Predicated region
    $region10: #{multi_layer_regressor_forward.1} parent=1 // pred_check
      _
    $region11: #{multi_layer_regressor_forward.1} parent=1 // pred_check_branch
      %33 = sbr.rel (0) target = $region13
    $region12: #{multi_layer_regressor_forward.1} parent=1 // pred_region
      _
    $region13: #{multi_layer_regressor_forward.1} parent=1 // pred_fallthru
      _
    // Predicated region
    $region14: #{multi_layer_regressor_forward.1} parent=1 // pred_check
      _
    $region15: #{multi_layer_regressor_forward.1} parent=1 // pred_check_branch
      %35 = sbr.rel (0) target = $region17
    $region16: #{multi_layer_regressor_forward.1} parent=1 // pred_region
      %37 = vsyncadd [#allocation5], 0
      %s38 = sshll.u32 %s3, 4
      %s39 = int_to_ptr.hbm [resolvable:$true] %s38
      %s40 = sshll.u32 [#allocation4], 4
      %s41 = int_to_ptr.vmem [resolvable:$true] %s40
      %46 = dma.hbm_to_vmem [thread:$0]  %s39, 1024, %s41, [#allocation5], 64, 64, 4
    $region17: #{multi_layer_regressor_forward.1} parent=1 // pred_fallthru
      _
    // Predicated region
    $region18: #{multi_layer_regressor_forward.1} parent=1 // pred_check
      _
    $region19: #{multi_layer_regressor_forward.1} parent=1 // pred_check_branch
      %48 = sbr.rel (0) target = $region21
    $region20: #{multi_layer_regressor_forward.1} parent=1 // pred_region
      _
    $region21: #{multi_layer_regressor_forward.1} parent=1 // pred_fallthru
      _
    // Predicated region
    $region22: #{multi_layer_regressor_forward.1} parent=1 // pred_check
      _
    $region23: #{multi_layer_regressor_forward.1} parent=1 // pred_check_branch
      %50 = sbr.rel (0) target = $region25
    $region24: #{multi_layer_regressor_forward.1} parent=1 // pred_region
      %52 = vsyncadd [#allocation5], 0
      %s53 = sshll.u32 %s5, 4
      %s54 = int_to_ptr.hbm [resolvable:$true] %s53
      %s55 = sshll.u32 [#allocation6], 4
      %s56 = int_to_ptr.vmem [resolvable:$true] %s55
      %61 = dma.hbm_to_vmem [thread:$0]  %s54, 1024, %s56, [#allocation5], 64, 64, 4
    $region25: #{multi_layer_regressor_forward.1} parent=1 // pred_fallthru
      _
    // Predicated region
    $region26: #{multi_layer_regressor_forward.1} parent=1 // pred_check
      _
    $region27: #{multi_layer_regressor_forward.1} parent=1 // pred_check_branch
      %63 = sbr.rel (0) target = $region29
    $region28: #{multi_layer_regressor_forward.1} parent=1 // pred_region
      _
    $region29: #{multi_layer_regressor_forward.1} parent=1 // pred_fallthru
      _
    // Predicated region
    $region30: #{multi_layer_regressor_forward.1} parent=1 // pred_check
      _
    $region31: #{multi_layer_regressor_forward.1} parent=1 // pred_check_branch
      %65 = sbr.rel (0) target = $region33
    $region32: #{multi_layer_regressor_forward.1} parent=1 // pred_region
      %67 = vsyncadd [#allocation8], 0
      %s68 = sshll.u32 %s7, 4
      %s69 = int_to_ptr.hbm [resolvable:$true] %s68
      %s70 = sshll.u32 [#allocation7], 4
      %s71 = int_to_ptr.vmem [resolvable:$true] %s70
      %76 = dma.hbm_to_vmem [thread:$0]  %s69, 1024, %s71, [#allocation8], 64, 64, 4
    $region33: #{multi_layer_regressor_forward.1} parent=1 // pred_fallthru
      _
    // Predicated region
    $region34: #{multi_layer_regressor_forward.1} parent=1 // pred_check
      _
    $region35: #{multi_layer_regressor_forward.1} parent=1 // pred_check_branch
      %78 = sbr.rel (0) target = $region37
    $region36: #{multi_layer_regressor_forward.1} parent=1 // pred_region
      _
    $region37: #{multi_layer_regressor_forward.1} parent=1 // pred_fallthru
      _
    // Predicated region
    $region38: #{multi_layer_regressor_forward.1} parent=1 // pred_check
      _
    $region39: #{multi_layer_regressor_forward.1} parent=1 // pred_check_branch
      %80 = sbr.rel (0) target = $region41
    $region40: #{multi_layer_regressor_forward.1} parent=1 // pred_region
      %82 = dma.done [#allocation3], 1024
    $region41: #{multi_layer_regressor_forward.1} parent=1 // pred_fallthru
      _
    // Predicated region
    $region42: #{multi_layer_regressor_forward.1} parent=1 // pred_check
      _
    $region43: #{multi_layer_regressor_forward.1} parent=1 // pred_check_branch
      %84 = sbr.rel (0) target = $region45
    $region44: #{multi_layer_regressor_forward.1} parent=1 // pred_region
      %86 = dma.done [#allocation5], 1024
    $region45: #{multi_layer_regressor_forward.1} parent=1 // pred_fallthru
      _
    // Predicated region
    $region46: #{multi_layer_regressor_forward.1} parent=1 // pred_check
      _
    $region47: #{multi_layer_regressor_forward.1} parent=1 // pred_check_branch
      %88 = sbr.rel (0) target = $region49
    $region48: #{multi_layer_regressor_forward.1} parent=1 // pred_region
      %90 = dma.done [#allocation5], 1024
    $region49: #{multi_layer_regressor_forward.1} parent=1 // pred_fallthru
      _
    // Predicated region
    $region50: #{multi_layer_regressor_forward.1} parent=1 // pred_check
      _
    $region51: #{multi_layer_regressor_forward.1} parent=1 // pred_check_branch
      %92 = sbr.rel (0) target = $region53
    $region52: #{multi_layer_regressor_forward.1} parent=1 // pred_region
      %94 = dma.done [#allocation8], 1024
    $region53: #{multi_layer_regressor_forward.1} parent=1 // pred_fallthru
      _
    %v95 = vld [vmem:[%s0] sm:$0xf]
    %v96 = vld [vmem:[%s0 + $0x4] sm:$0xf]
    %v97 = vld [vmem:[#allocation2] sm:$0xf]
    %v98 = vld [vmem:[#allocation2 + $0x4] sm:$0xf]
    %v99 = vld [vmem:[#allocation2 + $0x8] sm:$0xf]
    %v100 = vld [vmem:[#allocation2 + $0xc] sm:$0xf]
    %v101 = vld [vmem:[#allocation2 + $0x10] sm:$0xf]
    %v102 = vld [vmem:[#allocation2 + $0x14] sm:$0xf]
    %v103 = vld [vmem:[#allocation2 + $0x18] sm:$0xf]
    %v104 = vld [vmem:[#allocation2 + $0x1c] sm:$0xf]
    %v105 = vld [vmem:[#allocation2 + $0x20] sm:$0xf]
    %v106 = vld [vmem:[#allocation2 + $0x24] sm:$0xf]
    %v107 = vld [vmem:[#allocation2 + $0x28] sm:$0xf]
    %v108 = vld [vmem:[#allocation2 + $0x2c] sm:$0xf]
    %v109 = vld [vmem:[#allocation2 + $0x30] sm:$0xf]
    %v110 = vld [vmem:[#allocation2 + $0x34] sm:$0xf]
    %v111 = vld [vmem:[#allocation2 + $0x38] sm:$0xf]
    %v112 = vld [vmem:[#allocation2 + $0x3c] sm:$0xf]
    %v113 = vld [vmem:[%s2] sm:$0x1]
    %v115 = vperm.slane %v113, 0
    %v119 = vunpack.c.l.b16 %v95
    %v120 = vunpack.c.l.b16 %v96
    %v121 = vpack.c.b16 %v120, %v119
    %v139 = vunpack.c.l.b16 %v97
    %v140 = vunpack.c.l.b16 %v98
    %v141 = vunpack.c.l.b16 %v99
    %v142 = vunpack.c.l.b16 %v100
    %v143 = vunpack.c.l.b16 %v101
    %v144 = vunpack.c.l.b16 %v102
    %v145 = vunpack.c.l.b16 %v103
    %v146 = vunpack.c.l.b16 %v104
    %v147 = vunpack.c.l.b16 %v105
    %v148 = vunpack.c.l.b16 %v106
    %v149 = vunpack.c.l.b16 %v107
    %v150 = vunpack.c.l.b16 %v108
    %v151 = vunpack.c.l.b16 %v109
    %v152 = vunpack.c.l.b16 %v110
    %v153 = vunpack.c.l.b16 %v111
    %v154 = vunpack.c.l.b16 %v112
    %v155 = vpack.c.b16 %v140, %v139
    %v156 = vpack.c.b16 %v142, %v141
    %v157 = vpack.c.b16 %v144, %v143
    %v158 = vpack.c.b16 %v146, %v145
    %v159 = vpack.c.b16 %v148, %v147
    %v160 = vpack.c.b16 %v150, %v149
    %v161 = vpack.c.b16 %v152, %v151
    %v162 = vpack.c.b16 %v154, %v153
    %171 = vmatpush.bf16.msra.mxu0 %v162
    %172 = vmatpush.bf16.msra.mxu0 %v161
    %173 = vmatpush.bf16.msra.mxu0 %v160
    %174 = vmatpush.bf16.msra.mxu0 %v159
    %175 = vmatpush.bf16.msra.mxu0 %v158
    %176 = vmatpush.bf16.msra.mxu0 %v157
    %177 = vmatpush.bf16.msra.mxu0 %v156
    %178 = vmatpush.bf16.msra.mxu0 %v155
    %179 = vmatmul.bf16.gmra.mxu0 %v121
    %v180 = vpop.f32.mrf.mxu0
    %v181 = vadd.f32 %v115, %v180
    %v182 = vpop.f32.mrf.mxu0
    %v183 = vadd.f32 %v115, %v182
    %184 = vdwg.mxu0
    %v185 = vmax.f32 %v181, 0.0
    %v186 = vmax.f32 %v183, 0.0
    %v187 = vpack.c.bf16 %v186, %v185
    %v188 = vld [vmem:[#allocation4] sm:$0xf]
    %v189 = vld [vmem:[#allocation4 + $0x4] sm:$0xf]
    %v190 = vld [vmem:[#allocation4 + $0x8] sm:$0xf]
    %v191 = vld [vmem:[#allocation4 + $0xc] sm:$0xf]
    %v192 = vld [vmem:[#allocation4 + $0x10] sm:$0xf]
    %v193 = vld [vmem:[#allocation4 + $0x14] sm:$0xf]
    %v194 = vld [vmem:[#allocation4 + $0x18] sm:$0xf]
    %v195 = vld [vmem:[#allocation4 + $0x1c] sm:$0xf]
    %v196 = vld [vmem:[#allocation4 + $0x20] sm:$0xf]
    %v197 = vld [vmem:[#allocation4 + $0x24] sm:$0xf]
    %v198 = vld [vmem:[#allocation4 + $0x28] sm:$0xf]
    %v199 = vld [vmem:[#allocation4 + $0x2c] sm:$0xf]
    %v200 = vld [vmem:[#allocation4 + $0x30] sm:$0xf]
    %v201 = vld [vmem:[#allocation4 + $0x34] sm:$0xf]
    %v202 = vld [vmem:[#allocation4 + $0x38] sm:$0xf]
    %v203 = vld [vmem:[#allocation4 + $0x3c] sm:$0xf]
    %v204 = vld [vmem:[%s4] sm:$0x1]
    %v206 = vperm.slane %v204, 0
    %v224 = vunpack.c.l.b16 %v188
    %v225 = vunpack.c.l.b16 %v189
    %v226 = vunpack.c.l.b16 %v190
    %v227 = vunpack.c.l.b16 %v191
    %v228 = vunpack.c.l.b16 %v192
    %v229 = vunpack.c.l.b16 %v193
    %v230 = vunpack.c.l.b16 %v194
    %v231 = vunpack.c.l.b16 %v195
    %v232 = vunpack.c.l.b16 %v196
    %v233 = vunpack.c.l.b16 %v197
    %v234 = vunpack.c.l.b16 %v198
    %v235 = vunpack.c.l.b16 %v199
    %v236 = vunpack.c.l.b16 %v200
    %v237 = vunpack.c.l.b16 %v201
    %v238 = vunpack.c.l.b16 %v202
    %v239 = vunpack.c.l.b16 %v203
    %v240 = vpack.c.b16 %v225, %v224
    %v241 = vpack.c.b16 %v227, %v226
    %v242 = vpack.c.b16 %v229, %v228
    %v243 = vpack.c.b16 %v231, %v230
    %v244 = vpack.c.b16 %v233, %v232
    %v245 = vpack.c.b16 %v235, %v234
    %v246 = vpack.c.b16 %v237, %v236
    %v247 = vpack.c.b16 %v239, %v238
    %256 = vmatpush.bf16.msra.mxu0 %v247
    %257 = vmatpush.bf16.msra.mxu0 %v246
    %258 = vmatpush.bf16.msra.mxu0 %v245
    %259 = vmatpush.bf16.msra.mxu0 %v244
    %260 = vmatpush.bf16.msra.mxu0 %v243
    %261 = vmatpush.bf16.msra.mxu0 %v242
    %262 = vmatpush.bf16.msra.mxu0 %v241
    %263 = vmatpush.bf16.msra.mxu0 %v240
    %264 = vmatmul.bf16.gmra.mxu0 %v187
    %v265 = vpop.f32.mrf.mxu0
    %v266 = vadd.f32 %v206, %v265
    %v267 = vpop.f32.mrf.mxu0
    %v268 = vadd.f32 %v206, %v267
    %269 = vdwg.mxu0
    %v270 = vmax.f32 %v266, 0.0
    %v271 = vmax.f32 %v268, 0.0
    %v272 = vpack.c.bf16 %v271, %v270
    %v273 = vld [vmem:[#allocation6] sm:$0xf]
    %v274 = vld [vmem:[#allocation6 + $0x4] sm:$0xf]
    %v275 = vld [vmem:[#allocation6 + $0x8] sm:$0xf]
    %v276 = vld [vmem:[#allocation6 + $0xc] sm:$0xf]
    %v277 = vld [vmem:[#allocation6 + $0x10] sm:$0xf]
    %v278 = vld [vmem:[#allocation6 + $0x14] sm:$0xf]
    %v279 = vld [vmem:[#allocation6 + $0x18] sm:$0xf]
    %v280 = vld [vmem:[#allocation6 + $0x1c] sm:$0xf]
    %v281 = vld [vmem:[#allocation6 + $0x20] sm:$0xf]
    %v282 = vld [vmem:[#allocation6 + $0x24] sm:$0xf]
    %v283 = vld [vmem:[#allocation6 + $0x28] sm:$0xf]
    %v284 = vld [vmem:[#allocation6 + $0x2c] sm:$0xf]
    %v285 = vld [vmem:[#allocation6 + $0x30] sm:$0xf]
    %v286 = vld [vmem:[#allocation6 + $0x34] sm:$0xf]
    %v287 = vld [vmem:[#allocation6 + $0x38] sm:$0xf]
    %v288 = vld [vmem:[#allocation6 + $0x3c] sm:$0xf]
    %v289 = vld [vmem:[%s6] sm:$0x1]
    %v291 = vperm.slane %v289, 0
    %v309 = vunpack.c.l.b16 %v273
    %v310 = vunpack.c.l.b16 %v274
    %v311 = vunpack.c.l.b16 %v275
    %v312 = vunpack.c.l.b16 %v276
    %v313 = vunpack.c.l.b16 %v277
    %v314 = vunpack.c.l.b16 %v278
    %v315 = vunpack.c.l.b16 %v279
    %v316 = vunpack.c.l.b16 %v280
    %v317 = vunpack.c.l.b16 %v281
    %v318 = vunpack.c.l.b16 %v282
    %v319 = vunpack.c.l.b16 %v283
    %v320 = vunpack.c.l.b16 %v284
    %v321 = vunpack.c.l.b16 %v285
    %v322 = vunpack.c.l.b16 %v286
    %v323 = vunpack.c.l.b16 %v287
    %v324 = vunpack.c.l.b16 %v288
    %v325 = vpack.c.b16 %v310, %v309
    %v326 = vpack.c.b16 %v312, %v311
    %v327 = vpack.c.b16 %v314, %v313
    %v328 = vpack.c.b16 %v316, %v315
    %v329 = vpack.c.b16 %v318, %v317
    %v330 = vpack.c.b16 %v320, %v319
    %v331 = vpack.c.b16 %v322, %v321
    %v332 = vpack.c.b16 %v324, %v323
    %341 = vmatpush.bf16.msra.mxu0 %v332
    %342 = vmatpush.bf16.msra.mxu0 %v331
    %343 = vmatpush.bf16.msra.mxu0 %v330
    %344 = vmatpush.bf16.msra.mxu0 %v329
    %345 = vmatpush.bf16.msra.mxu0 %v328
    %346 = vmatpush.bf16.msra.mxu0 %v327
    %347 = vmatpush.bf16.msra.mxu0 %v326
    %348 = vmatpush.bf16.msra.mxu0 %v325
    %349 = vmatmul.bf16.gmra.mxu0 %v272
    %v350 = vpop.f32.mrf.mxu0
    %v351 = vadd.f32 %v291, %v350
    %v352 = vpop.f32.mrf.mxu0
    %v353 = vadd.f32 %v291, %v352
    %354 = vdwg.mxu0
    %v355 = vmax.f32 %v351, 0.0
    %v356 = vmax.f32 %v353, 0.0
    %v357 = vpack.c.bf16 %v356, %v355
    %v358 = vld [vmem:[#allocation7] sm:$0xf]
    %v359 = vld [vmem:[#allocation7 + $0x4] sm:$0xf]
    %v360 = vld [vmem:[#allocation7 + $0x8] sm:$0xf]
    %v361 = vld [vmem:[#allocation7 + $0xc] sm:$0xf]
    %v362 = vld [vmem:[#allocation7 + $0x10] sm:$0xf]
    %v363 = vld [vmem:[#allocation7 + $0x14] sm:$0xf]
    %v364 = vld [vmem:[#allocation7 + $0x18] sm:$0xf]
    %v365 = vld [vmem:[#allocation7 + $0x1c] sm:$0xf]
    %v366 = vld [vmem:[#allocation7 + $0x20] sm:$0xf]
    %v367 = vld [vmem:[#allocation7 + $0x24] sm:$0xf]
    %v368 = vld [vmem:[#allocation7 + $0x28] sm:$0xf]
    %v369 = vld [vmem:[#allocation7 + $0x2c] sm:$0xf]
    %v370 = vld [vmem:[#allocation7 + $0x30] sm:$0xf]
    %v371 = vld [vmem:[#allocation7 + $0x34] sm:$0xf]
    %v372 = vld [vmem:[#allocation7 + $0x38] sm:$0xf]
    %v373 = vld [vmem:[#allocation7 + $0x3c] sm:$0xf]
    %v374 = vld [vmem:[%s8] sm:$0x1]
    %v376 = vperm.slane %v374, 0
    %v394 = vunpack.c.l.b16 %v358
    %v395 = vunpack.c.l.b16 %v359
    %v396 = vunpack.c.l.b16 %v360
    %v397 = vunpack.c.l.b16 %v361
    %v398 = vunpack.c.l.b16 %v362
    %v399 = vunpack.c.l.b16 %v363
    %v400 = vunpack.c.l.b16 %v364
    %v401 = vunpack.c.l.b16 %v365
    %v402 = vunpack.c.l.b16 %v366
    %v403 = vunpack.c.l.b16 %v367
    %v404 = vunpack.c.l.b16 %v368
    %v405 = vunpack.c.l.b16 %v369
    %v406 = vunpack.c.l.b16 %v370
    %v407 = vunpack.c.l.b16 %v371
    %v408 = vunpack.c.l.b16 %v372
    %v409 = vunpack.c.l.b16 %v373
    %v410 = vpack.c.b16 %v395, %v394
    %v411 = vpack.c.b16 %v397, %v396
    %v412 = vpack.c.b16 %v399, %v398
    %v413 = vpack.c.b16 %v401, %v400
    %v414 = vpack.c.b16 %v403, %v402
    %v415 = vpack.c.b16 %v405, %v404
    %v416 = vpack.c.b16 %v407, %v406
    %v417 = vpack.c.b16 %v409, %v408
    %426 = vmatpush.bf16.msra.mxu0 %v417
    %427 = vmatpush.bf16.msra.mxu0 %v416
    %428 = vmatpush.bf16.msra.mxu0 %v415
    %429 = vmatpush.bf16.msra.mxu0 %v414
    %430 = vmatpush.bf16.msra.mxu0 %v413
    %431 = vmatpush.bf16.msra.mxu0 %v412
    %432 = vmatpush.bf16.msra.mxu0 %v411
    %433 = vmatpush.bf16.msra.mxu0 %v410
    %434 = vmatmul.bf16.gmra.mxu0 %v357
    %v435 = vpop.f32.mrf.mxu0
    %v436 = vadd.f32 %v376, %v435
    %v437 = vpop.f32.mrf.mxu0
    %v438 = vadd.f32 %v376, %v437
    %439 = vdwg.mxu0
    %440 = vst [vmem:[%s9] sm:$0xff] %v436
    %441 = vst [vmem:[%s9 + $0x8] sm:$0xff] %v438
    // Predicated region
    $region54: #{multi_layer_regressor_forward.1} parent=1 // pred_check
      _
    $region55: #{multi_layer_regressor_forward.1} parent=1 // pred_check_branch
      %443 = sbr.rel (0) target = $region57
    $region56: #{multi_layer_regressor_forward.1} parent=1 // pred_region
      _
    $region57: #{multi_layer_regressor_forward.1} parent=1 // pred_fallthru
      _
    // Predicated region
    $region58: #{multi_layer_regressor_forward.1} parent=1 // pred_check
      _
    $region59: #{multi_layer_regressor_forward.1} parent=1 // pred_check_branch
      %445 = sbr.rel (0) target = $region61
    $region60: #{multi_layer_regressor_forward.1} parent=1 // pred_region
      _
    $region61: #{multi_layer_regressor_forward.1} parent=1 // pred_fallthru
      _
    %446 = vsyncpa [#allocation3], 1
    %447 = vsyncpa [#allocation5], 1
    %448 = vsyncpa [#allocation8], 1

</llo_original>
